<compile_context>
chip_gen: v7x
topology: tpu7x:2x2x1
jax: 0.10.0
libtpu: 0.0.40
codegen_flags: <defaults>
</compile_context>

<pallas_src>
import math

import jax
import jax.numpy as jnp
from jax.experimental import pallas as pl
from jax.experimental.pallas import tpu as pltpu

WIDTH = 20          # create_mlp(width=20, ...)
IN_DIM = 3          # MLP consumes x_in_l
OUT_DIM = 1
TILE_N = 1024       # points per grid step (lane axis, multiple of 128)


# ----------------------------------------------------------------------------
# Pallas kernel: rotation + lorentzian + 3-layer softplus MLP, fused per tile.
# Transposed layout: features on sublanes, points on lanes.
# ----------------------------------------------------------------------------
def _light_mlp_kernel(scal_ref,            # SMEM (2,)  = [tau, gamma]
                      rt_ref, tcl_ref,     # (3,3) = R^T, (3,1) = t_c2l^T
                      w1t_ref, b1_ref,     # (W,3), (W,1)
                      w2t_ref, b2_ref,     # (W,W), (W,1)
                      w3t_ref, b3_ref,     # (1,W), (1,1)
                      pts_ref,             # (3, tile_n)   points on lanes
                      out_ref):            # (1, tile_n)   lane-dense output row
    tau = scal_ref[0]
    neg_gamma = -scal_ref[1]

    def softplus(v):
        # matches torch.nn.Softplus (beta=1, threshold=20); the inner minimum
        # keeps exp() finite on the (discarded) v > 20 branch.
        return jnp.where(v > 20.0, v, jnp.log1p(jnp.exp(jnp.minimum(v, 20.0))))

    # camera -> light, column form: x_l = R^T @ pts^T + t_c2l^T
    x = jnp.dot(rt_ref[...], pts_ref[...],
                preferred_element_type=jnp.float32) + tcl_ref[...]        # (3, tn)

    # Lorentzian falloff on a full-lane (1, tn) row: 1 / (tau + |x|^2)^gamma
    d2 = jnp.sum(x * x, axis=0, keepdims=True)                            # (1, tn)
    i_falloff = jnp.exp(neg_gamma * jnp.log(tau + d2))                    # (1, tn)

    # MLP:  Linear -> Softplus -> Linear -> Softplus -> Linear -> Softplus
    h = softplus(jnp.dot(w1t_ref[...], x,
                         preferred_element_type=jnp.float32) + b1_ref[...])   # (W, tn)
    h = softplus(jnp.dot(w2t_ref[...], h,
                         preferred_element_type=jnp.float32) + b2_ref[...])   # (W, tn)
    y = softplus(jnp.dot(w3t_ref[...], h,
                         preferred_element_type=jnp.float32) + b3_ref[...])   # (1, tn)

    out_ref[...] = i_falloff * y                                          # (1, tn)


# ----------------------------------------------------------------------------
# Parameter setup (plain-JAX glue)
# ----------------------------------------------------------------------------
def so3_exp(r_vec):
    """Rodrigues formula: rotation matrix for rotation vector r_vec (3,)."""
    theta = jnp.sqrt(jnp.sum(r_vec * r_vec))
    k = r_vec / jnp.maximum(theta, 1e-12)
    K = jnp.array([[0.0, -k[2], k[1]],
                   [k[2], 0.0, -k[0]],
                   [-k[1], k[0], 0.0]], dtype=jnp.float32)
    return (jnp.eye(3, dtype=jnp.float32)
            + jnp.sin(theta) * K
            + (1.0 - jnp.cos(theta)) * (K @ K))


def xavier_uniform(key, fan_in, fan_out):
    bound = math.sqrt(6.0 / (fan_in + fan_out))
    return jax.random.uniform(key, (fan_in, fan_out), jnp.float32, -bound, bound)


def make_params(key):
    k1, k2, k3 = jax.random.split(key, 3)
    # LightBaseLie defaults
    t_vec = jnp.array([-0.2266, -0.0022, 0.0761], dtype=jnp.float32)
    r_vec = jnp.array([-0.0027, 0.36, -0.027], dtype=jnp.float32)
    gamma_log = jnp.float32(-1.59)
    tau_log = jnp.float32(-1.59)

    R = so3_exp(r_vec)                               # rotation l2c
    t_c2l = -(t_vec[None, :] @ R)                    # (1, 3)

    params = {
        "scal": jnp.stack([jnp.exp(tau_log), jnp.exp(gamma_log)]),   # [tau, gamma]
        "R": R,
        "t_c2l": t_c2l,
        "W1": xavier_uniform(k1, IN_DIM, WIDTH),
        "b1": jnp.zeros((1, WIDTH), jnp.float32),
        "W2": xavier_uniform(k2, WIDTH, WIDTH),
        "b2": jnp.zeros((1, WIDTH), jnp.float32),
        "W3": xavier_uniform(k3, WIDTH, OUT_DIM),
        "b3": jnp.zeros((1, OUT_DIM), jnp.float32),
    }
    return params


# ----------------------------------------------------------------------------
# Wrapper
# ----------------------------------------------------------------------------
def light_mlp_forward(pts, params, tile_n=TILE_N):
    B, P, _ = pts.shape
    N = B * P

    # Don't pad tiny problems up to a huge tile; keep lane axis a multiple of 128.
    tile_n = min(tile_n, max(128, ((N + 127) // 128) * 128))
    n_tiles = (N + tile_n - 1) // tile_n
    Np = n_tiles * tile_n

    x = pts.reshape(N, 3).astype(jnp.float32)
    if Np != N:
        x = jnp.pad(x, ((0, Np - N), (0, 0)))     # zero rows -> benign, sliced off
    x_t = x.T                                     # (3, Np): points on lanes

    # Transposed / column-form parameters (tiny XLA transposes in the wrapper).
    rt = params["R"].T                            # (3, 3)
    tcl = params["t_c2l"].T                       # (3, 1)
    w1t, b1 = params["W1"].T, params["b1"].T      # (W, 3), (W, 1)
    w2t, b2 = params["W2"].T, params["b2"].T      # (W, W), (W, 1)
    w3t, b3 = params["W3"].T, params["b3"].T      # (1, W), (1, 1)

    fixed = lambda i: (0, 0)
    out = pl.pallas_call(
        _light_mlp_kernel,
        out_shape=jax.ShapeDtypeStruct((1, Np), jnp.float32),
        grid=(n_tiles,),
        in_specs=[
            pl.BlockSpec(memory_space=pltpu.MemorySpace.SMEM),   # [tau, gamma]
            pl.BlockSpec((3, 3), fixed),                         # R^T
            pl.BlockSpec((3, 1), fixed),                         # t_c2l^T
            pl.BlockSpec((WIDTH, IN_DIM), fixed),                # W1^T
            pl.BlockSpec((WIDTH, 1), fixed),                     # b1^T
            pl.BlockSpec((WIDTH, WIDTH), fixed),                 # W2^T
            pl.BlockSpec((WIDTH, 1), fixed),                     # b2^T
            pl.BlockSpec((OUT_DIM, WIDTH), fixed),               # W3^T
            pl.BlockSpec((OUT_DIM, 1), fixed),                   # b3^T
            pl.BlockSpec((3, tile_n), lambda i: (0, i)),         # pts^T tile
        ],
        out_specs=pl.BlockSpec((1, tile_n), lambda i: (0, i)),   # lane-dense row
        compiler_params=pltpu.CompilerParams(
            dimension_semantics=("parallel",)),                  # v7x: 2-TC shard
    )(params["scal"], rt, tcl, w1t, b1, w2t, b2, w3t, b3, x_t)

    return out[0, :N].reshape(B, P)


# ----------------------------------------------------------------------------
# Pure-JAX reference (for a sanity check)
# ----------------------------------------------------------------------------
def light_mlp_reference(pts, params):
    def softplus(v):
        return jnp.where(v > 20.0, v, jnp.log1p(jnp.exp(jnp.minimum(v, 20.0))))

    tau, gamma = params["scal"][0], params["scal"][1]
    x = pts @ params["R"] + params["t_c2l"][None, :, :]           # (B,P,3)
    d2 = jnp.sum(x * x, axis=-1)
    i_falloff = 1.0 / jnp.power(tau + d2, gamma)
    h = softplus(x @ params["W1"] + params["b1"])
    h = softplus(h @ params["W2"] + params["b2"])
    y = softplus(h @ params["W3"] + params["b3"])
    return i_falloff * y[..., 0]


if __name__ == "__main__":
    key = jax.random.PRNGKey(0)
    kp, kx = jax.random.split(key)
    params = make_params(kp)

    B, P = 2, 64
    pts = jax.random.normal(kx, (B, P, 3), dtype=jnp.float32)      # camera-space points

    out = light_mlp_forward(pts, params)
    out = jax.block_until_ready(out)

    ref = light_mlp_reference(pts, params)
    assert out.shape == (B, P)
    assert jnp.allclose(out, ref, atol=1e-5, rtol=1e-4), "mismatch vs reference"

    print("KERNEL_OK")
</pallas_src>

<mosaic_0001>
module attributes {stable_mosaic.version = 11 : i64} {
  func.func @_light_mlp_kernel(%arg0: i32, %arg1: memref<2xf32, #tpu.memory_space<smem>>, %arg2: memref<3x3xf32, #tpu.memory_space<vmem>>, %arg3: memref<3x1xf32, #tpu.memory_space<vmem>>, %arg4: memref<20x3xf32, #tpu.memory_space<vmem>>, %arg5: memref<20x1xf32, #tpu.memory_space<vmem>>, %arg6: memref<20x20xf32, #tpu.memory_space<vmem>>, %arg7: memref<20x1xf32, #tpu.memory_space<vmem>>, %arg8: memref<1x20xf32, #tpu.memory_space<vmem>>, %arg9: memref<1x1xf32, #tpu.memory_space<vmem>>, %arg10: memref<3x128xf32, #tpu.memory_space<vmem>>, %arg11: memref<1x128xf32, #tpu.memory_space<vmem>>) attributes {dimension_semantics = [#tpu.dimension_semantics<parallel>], iteration_bounds = array<i64: 1>, scalar_prefetch = 0 : i64, scratch_operands = 0 : i64, tpu.core_type = #tpu.core_type<tc>, window_params = [{transform_indices = @transform_0, window_bounds = array<i64: 2>}, {pipeline_mode = #tpu.pipeline_mode<synchronous>, transform_indices = @transform_1, window_bounds = array<i64: 3, 3>}, {pipeline_mode = #tpu.pipeline_mode<synchronous>, transform_indices = @transform_2, window_bounds = array<i64: 3, 1>}, {pipeline_mode = #tpu.pipeline_mode<synchronous>, transform_indices = @transform_3, window_bounds = array<i64: 20, 3>}, {pipeline_mode = #tpu.pipeline_mode<synchronous>, transform_indices = @transform_4, window_bounds = array<i64: 20, 1>}, {pipeline_mode = #tpu.pipeline_mode<synchronous>, transform_indices = @transform_5, window_bounds = array<i64: 20, 20>}, {pipeline_mode = #tpu.pipeline_mode<synchronous>, transform_indices = @transform_6, window_bounds = array<i64: 20, 1>}, {pipeline_mode = #tpu.pipeline_mode<synchronous>, transform_indices = @transform_7, window_bounds = array<i64: 1, 20>}, {pipeline_mode = #tpu.pipeline_mode<synchronous>, transform_indices = @transform_8, window_bounds = array<i64: 1, 1>}, {transform_indices = @transform_9, window_bounds = array<i64: 3, 128>}, {transform_indices = @transform_10, window_bounds = array<i64: 1, 128>}]} {
    %c0 = arith.constant 0 : index
    %0 = memref.load %arg1[%c0] : memref<2xf32, #tpu.memory_space<smem>>
    %c1 = arith.constant 1 : index
    %1 = memref.load %arg1[%c1] : memref<2xf32, #tpu.memory_space<smem>>
    %cst = arith.constant 0.000000e+00 : f32
    %2 = arith.subf %cst, %1 : f32
    %c0_0 = arith.constant 0 : index
    %c0_1 = arith.constant 0 : index
    %3 = vector.load %arg2[%c0_0, %c0_1] : memref<3x3xf32, #tpu.memory_space<vmem>>, vector<3x3xf32>
    %c0_2 = arith.constant 0 : index
    %c0_3 = arith.constant 0 : index
    %4 = vector.load %arg10[%c0_2, %c0_3] : memref<3x128xf32, #tpu.memory_space<vmem>>, vector<3x128xf32>
    %cst_4 = arith.constant dense<0.000000e+00> : vector<3x128xf32>
    %5 = tpu.matmul %3, %4, %cst_4 {dimension_numbers = #tpu.dot_dimension_numbers<[1], [0], [0], [1], [0, 0, 1, 1], [], []>} : vector<3x3xf32>, vector<3x128xf32>, vector<3x128xf32> -> vector<3x128xf32>
    %c0_5 = arith.constant 0 : index
    %c0_6 = arith.constant 0 : index
    %6 = vector.load %arg3[%c0_5, %c0_6] : memref<3x1xf32, #tpu.memory_space<vmem>>, vector<3x1xf32>
    %7 = vector.broadcast %6 : vector<3x1xf32> to vector<3x128xf32>
    %8 = arith.addf %5, %7 : vector<3x128xf32>
    %9 = arith.mulf %8, %8 : vector<3x128xf32>
    %cst_7 = arith.constant dense<0.000000e+00> : vector<128xf32>
    %10 = vector.multi_reduction <add>, %9, %cst_7 [0] : vector<3x128xf32> to vector<128xf32>
    %11 = vector.shape_cast %10 : vector<128xf32> to vector<1x128xf32>
    %12 = vector.broadcast %0 : f32 to vector<1x128xf32>
    %13 = arith.addf %12, %11 : vector<1x128xf32>
    %14 = math.log %13 : vector<1x128xf32>
    %15 = vector.broadcast %2 : f32 to vector<1x128xf32>
    %16 = arith.mulf %15, %14 : vector<1x128xf32>
    %17 = math.exp %16 : vector<1x128xf32>
    %c0_8 = arith.constant 0 : index
    %c0_9 = arith.constant 0 : index
    %18 = vector.load %arg4[%c0_8, %c0_9] : memref<20x3xf32, #tpu.memory_space<vmem>>, vector<20x3xf32>
    %cst_10 = arith.constant dense<0.000000e+00> : vector<20x128xf32>
    %19 = tpu.matmul %18, %8, %cst_10 {dimension_numbers = #tpu.dot_dimension_numbers<[1], [0], [0], [1], [0, 0, 1, 1], [], []>} : vector<20x3xf32>, vector<3x128xf32>, vector<20x128xf32> -> vector<20x128xf32>
    %c0_11 = arith.constant 0 : index
    %c0_12 = arith.constant 0 : index
    %20 = vector.load %arg5[%c0_11, %c0_12] : memref<20x1xf32, #tpu.memory_space<vmem>>, vector<20x1xf32>
    %21 = vector.broadcast %20 : vector<20x1xf32> to vector<20x128xf32>
    %22 = arith.addf %19, %21 : vector<20x128xf32>
    %cst_13 = arith.constant 2.000000e+01 : f32
    %23 = vector.broadcast %cst_13 : f32 to vector<20x128xf32>
    %24 = arith.cmpf ogt, %22, %23 : vector<20x128xf32>
    %cst_14 = arith.constant 2.000000e+01 : f32
    %25 = vector.broadcast %cst_14 : f32 to vector<20x128xf32>
    %26 = arith.minimumf %22, %25 : vector<20x128xf32>
    %27 = math.exp %26 : vector<20x128xf32>
    %28 = math.log1p %27 : vector<20x128xf32>
    %29 = arith.select %24, %22, %28 : vector<20x128xi1>, vector<20x128xf32>
    %c0_15 = arith.constant 0 : index
    %c0_16 = arith.constant 0 : index
    %30 = vector.load %arg6[%c0_15, %c0_16] : memref<20x20xf32, #tpu.memory_space<vmem>>, vector<20x20xf32>
    %cst_17 = arith.constant dense<0.000000e+00> : vector<20x128xf32>
    %31 = tpu.matmul %30, %29, %cst_17 {dimension_numbers = #tpu.dot_dimension_numbers<[1], [0], [0], [1], [0, 0, 1, 1], [], []>} : vector<20x20xf32>, vector<20x128xf32>, vector<20x128xf32> -> vector<20x128xf32>
    %c0_18 = arith.constant 0 : index
    %c0_19 = arith.constant 0 : index
    %32 = vector.load %arg7[%c0_18, %c0_19] : memref<20x1xf32, #tpu.memory_space<vmem>>, vector<20x1xf32>
    %33 = vector.broadcast %32 : vector<20x1xf32> to vector<20x128xf32>
    %34 = arith.addf %31, %33 : vector<20x128xf32>
    %cst_20 = arith.constant 2.000000e+01 : f32
    %35 = vector.broadcast %cst_20 : f32 to vector<20x128xf32>
    %36 = arith.cmpf ogt, %34, %35 : vector<20x128xf32>
    %cst_21 = arith.constant 2.000000e+01 : f32
    %37 = vector.broadcast %cst_21 : f32 to vector<20x128xf32>
    %38 = arith.minimumf %34, %37 : vector<20x128xf32>
    %39 = math.exp %38 : vector<20x128xf32>
    %40 = math.log1p %39 : vector<20x128xf32>
    %41 = arith.select %36, %34, %40 : vector<20x128xi1>, vector<20x128xf32>
    %c0_22 = arith.constant 0 : index
    %c0_23 = arith.constant 0 : index
    %42 = vector.load %arg8[%c0_22, %c0_23] : memref<1x20xf32, #tpu.memory_space<vmem>>, vector<1x20xf32>
    %cst_24 = arith.constant dense<0.000000e+00> : vector<1x128xf32>
    %43 = tpu.matmul %42, %41, %cst_24 {dimension_numbers = #tpu.dot_dimension_numbers<[1], [0], [0], [1], [0, 0, 1, 1], [], []>} : vector<1x20xf32>, vector<20x128xf32>, vector<1x128xf32> -> vector<1x128xf32>
    %c0_25 = arith.constant 0 : index
    %c0_26 = arith.constant 0 : index
    %44 = vector.load %arg9[%c0_25, %c0_26] : memref<1x1xf32, #tpu.memory_space<vmem>>, vector<1x1xf32>
    %45 = vector.broadcast %44 : vector<1x1xf32> to vector<1x128xf32>
    %46 = arith.addf %43, %45 : vector<1x128xf32>
    %cst_27 = arith.constant 2.000000e+01 : f32
    %47 = vector.broadcast %cst_27 : f32 to vector<1x128xf32>
    %48 = arith.cmpf ogt, %46, %47 : vector<1x128xf32>
    %cst_28 = arith.constant 2.000000e+01 : f32
    %49 = vector.broadcast %cst_28 : f32 to vector<1x128xf32>
    %50 = arith.minimumf %46, %49 : vector<1x128xf32>
    %51 = math.exp %50 : vector<1x128xf32>
    %52 = math.log1p %51 : vector<1x128xf32>
    %53 = arith.select %48, %46, %52 : vector<1x128xi1>, vector<1x128xf32>
    %54 = arith.mulf %17, %53 : vector<1x128xf32>
    %c0_29 = arith.constant 0 : index
    %c0_30 = arith.constant 0 : index
    %55 = vector.load %arg11[%c0_29, %c0_30] : memref<1x128xf32, #tpu.memory_space<vmem>>, vector<1x128xf32>
    tpu.vector_store %arg11[%c0_29, %c0_30], %54 {strides = array<i32>} : memref<1x128xf32, #tpu.memory_space<vmem>>, vector<1x128xf32>,
    return
  }
  func.func @transform_0(%arg0: i32) -> i32 {
    %c0_i32 = arith.constant 0 : i32
    %c0_i32_0 = arith.constant 0 : i32
    return %c0_i32 : i32
  }
  func.func @transform_1(%arg0: i32) -> (i32, i32) {
    %c0_i32 = arith.constant 0 : i32
    %c0_i32_0 = arith.constant 0 : i32
    %c0_i32_1 = arith.constant 0 : i32
    return %c0_i32, %c0_i32_0 : i32, i32
  }
  func.func @transform_2(%arg0: i32) -> (i32, i32) {
    %c0_i32 = arith.constant 0 : i32
    %c0_i32_0 = arith.constant 0 : i32
    %c0_i32_1 = arith.constant 0 : i32
    return %c0_i32, %c0_i32_0 : i32, i32
  }
  func.func @transform_3(%arg0: i32) -> (i32, i32) {
    %c0_i32 = arith.constant 0 : i32
    %c0_i32_0 = arith.constant 0 : i32
    %c0_i32_1 = arith.constant 0 : i32
    return %c0_i32, %c0_i32_0 : i32, i32
  }
  func.func @transform_4(%arg0: i32) -> (i32, i32) {
    %c0_i32 = arith.constant 0 : i32
    %c0_i32_0 = arith.constant 0 : i32
    %c0_i32_1 = arith.constant 0 : i32
    return %c0_i32, %c0_i32_0 : i32, i32
  }
  func.func @transform_5(%arg0: i32) -> (i32, i32) {
    %c0_i32 = arith.constant 0 : i32
    %c0_i32_0 = arith.constant 0 : i32
    %c0_i32_1 = arith.constant 0 : i32
    return %c0_i32, %c0_i32_0 : i32, i32
  }
  func.func @transform_6(%arg0: i32) -> (i32, i32) {
    %c0_i32 = arith.constant 0 : i32
    %c0_i32_0 = arith.constant 0 : i32
    %c0_i32_1 = arith.constant 0 : i32
    return %c0_i32, %c0_i32_0 : i32, i32
  }
  func.func @transform_7(%arg0: i32) -> (i32, i32) {
    %c0_i32 = arith.constant 0 : i32
    %c0_i32_0 = arith.constant 0 : i32
    %c0_i32_1 = arith.constant 0 : i32
    return %c0_i32, %c0_i32_0 : i32, i32
  }
  func.func @transform_8(%arg0: i32) -> (i32, i32) {
    %c0_i32 = arith.constant 0 : i32
    %c0_i32_0 = arith.constant 0 : i32
    %c0_i32_1 = arith.constant 0 : i32
    return %c0_i32, %c0_i32_0 : i32, i32
  }
  func.func @transform_9(%arg0: i32) -> (i32, i32) {
    %c0_i32 = arith.constant 0 : i32
    %c0_i32_0 = arith.constant 0 : i32
    return %c0_i32, %arg0 : i32, i32
  }
  func.func @transform_10(%arg0: i32) -> (i32, i32) {
    %c0_i32 = arith.constant 0 : i32
    %c0_i32_0 = arith.constant 0 : i32
    return %c0_i32, %arg0 : i32, i32
  }
}

</mosaic_0001>

<llo_original>
// kernel: tpu_custom_call.1
$region0: #{tpu_custom_call.1}
  #allocation0 [shape = 'u32[]', space=smem, size = 0x4, offset = 0x4, fixed_abs, tag = 'smem constant byte address 0x4 - core index']
  #allocation1 [shape = 'u32[144,128]{1,0:T(1,128)}', space=vmem, size = 0x12000, scoped, tag = 'internal scratch']
  #allocation2 [shape = 'f32[1,1]{1,0:T(1,128)S(1)}', space=vmem, size = 0x200, scoped, tag = 'scoped memory for tpu_custom_call.1']
  %s0 = inlined_call_operand.vmem [shape: f32[2], index: 0, kind: input, shape index: {}]
  %s1 = inlined_call_operand.vmem [shape: f32[3,3], index: 1, kind: input, shape index: {}]
  %s2 = inlined_call_operand.vmem [shape: f32[3,1], index: 2, kind: input, shape index: {}]
  %s3 = inlined_call_operand.vmem [shape: f32[20,3], index: 3, kind: input, shape index: {}]
  %s4 = inlined_call_operand.vmem [shape: f32[20,1], index: 4, kind: input, shape index: {}]
  %s5 = inlined_call_operand.vmem [shape: f32[20,20], index: 5, kind: input, shape index: {}]
  %s6 = inlined_call_operand.vmem [shape: f32[20,1], index: 6, kind: input, shape index: {}]
  %s7 = inlined_call_operand.vmem [shape: f32[1,20], index: 7, kind: input, shape index: {}]
  %s8 = inlined_call_operand.<no memory space> [shape: f32[1,1], index: 8, kind: input, shape index: {}]
  %s9 = inlined_call_operand.vmem [shape: f32[3,128], index: 9, kind: input, shape index: {}]
  %s10 = inlined_call_operand.hbm [shape: f32[1,128], index: 10, kind: output, shape index: {}]
  %s11 = sld [smem:[#allocation0]]
  $region54: #{tpu_custom_call.1} parent=0
    _
  %s13 = ssub.s32 1, %s11
  %s14 = scalar_select 0, %s13, %s11
  %v15 = vstv %s8
  %16 = vst [vmem:[#allocation2] sm:$0x1] %v15
  $region1: #{tpu_custom_call.1} parent=0
    #allocation3 [shape = 'u8[512]{0}', space=smem, size = 0x200, scoped, tag = 'input window, operand 0, single buffered']
    #allocation4 [shape = 's32[1]{0}', space=sflag, size = 0x4, scoped, tag = 'scoped memory for tpu_custom_call.1']
    #allocation5 [shape = 's32[1]{0}', space=sflag, size = 0x4, scoped, tag = 'scoped memory for tpu_custom_call.1']
    #allocation6 [shape = 'u8[512]{0}', space=vmem, size = 0x400, scoped, tag = 'output window, operand 0, single buffered']
    %17 = vsyncpa [#allocation5], 0
    %18 = vsyncpa [#allocation4], 0
    // Predicated region
    $region2: #{tpu_custom_call.1} parent=1 // pred_check
      _
    $region3: #{tpu_custom_call.1} parent=1 // pred_check_branch
      %20 = sbr.rel (0) target = $region5
    $region4: #{tpu_custom_call.1} parent=1 // pred_region
      %s22 = ssub.s32 16, 16
      %23 = vsyncadd [#allocation5], %s22
      %s25 = sshll.u32 %s0, 4
      %s26 = int_to_ptr.vmem [resolvable:$true] %s25
      %28 = dma.vmem_to_smem %s26, 16, [#allocation3], [#allocation5]
    $region5: #{tpu_custom_call.1} parent=1 // pred_fallthru
      _
    // Predicated region
    $region6: #{tpu_custom_call.1} parent=1 // pred_check
      _
    $region7: #{tpu_custom_call.1} parent=1 // pred_check_branch
      %30 = sbr.rel (0) target = $region9
    $region8: #{tpu_custom_call.1} parent=1 // pred_region
      _
    $region9: #{tpu_custom_call.1} parent=1 // pred_fallthru
      _
    // Predicated region
    $region10: #{tpu_custom_call.1} parent=1 // pred_check
      _
    $region11: #{tpu_custom_call.1} parent=1 // pred_check_branch
      %32 = sbr.rel (0) target = $region13
    $region12: #{tpu_custom_call.1} parent=1 // pred_region
      _
    $region13: #{tpu_custom_call.1} parent=1 // pred_fallthru
      _
    // Predicated region
    $region14: #{tpu_custom_call.1} parent=1 // pred_check
      _
    $region15: #{tpu_custom_call.1} parent=1 // pred_check_branch
      %34 = sbr.rel (0) target = $region17
    $region16: #{tpu_custom_call.1} parent=1 // pred_region
      _
    $region17: #{tpu_custom_call.1} parent=1 // pred_fallthru
      _
    // Predicated region
    $region18: #{tpu_custom_call.1} parent=1 // pred_check
      _
    $region19: #{tpu_custom_call.1} parent=1 // pred_check_branch
      %36 = sbr.rel (0) target = $region21
    $region20: #{tpu_custom_call.1} parent=1 // pred_region
      _
    $region21: #{tpu_custom_call.1} parent=1 // pred_fallthru
      _
    // Predicated region
    $region22: #{tpu_custom_call.1} parent=1 // pred_check
      _
    $region23: #{tpu_custom_call.1} parent=1 // pred_check_branch
      %38 = sbr.rel (0) target = $region25
    $region24: #{tpu_custom_call.1} parent=1 // pred_region
      _
    $region25: #{tpu_custom_call.1} parent=1 // pred_fallthru
      _
    // Predicated region
    $region26: #{tpu_custom_call.1} parent=1 // pred_check
      _
    $region27: #{tpu_custom_call.1} parent=1 // pred_check_branch
      %40 = sbr.rel (0) target = $region29
    $region28: #{tpu_custom_call.1} parent=1 // pred_region
      _
    $region29: #{tpu_custom_call.1} parent=1 // pred_fallthru
      _
    // Predicated region
    $region30: #{tpu_custom_call.1} parent=1 // pred_check
      _
    $region31: #{tpu_custom_call.1} parent=1 // pred_check_branch
      %42 = sbr.rel (0) target = $region33
    $region32: #{tpu_custom_call.1} parent=1 // pred_region
      _
    $region33: #{tpu_custom_call.1} parent=1 // pred_fallthru
      _
    // Predicated region
    $region34: #{tpu_custom_call.1} parent=1 // pred_check
      _
    $region35: #{tpu_custom_call.1} parent=1 // pred_check_branch
      %44 = sbr.rel (0) target = $region37
    $region36: #{tpu_custom_call.1} parent=1 // pred_region
      _
    $region37: #{tpu_custom_call.1} parent=1 // pred_fallthru
      _
    // Predicated region
    $region38: #{tpu_custom_call.1} parent=1 // pred_check
      _
    $region39: #{tpu_custom_call.1} parent=1 // pred_check_branch
      %46 = sbr.rel (0) target = $region41
    $region40: #{tpu_custom_call.1} parent=1 // pred_region
      _
    $region41: #{tpu_custom_call.1} parent=1 // pred_fallthru
      _
    // Predicated region
    $region42: #{tpu_custom_call.1} parent=1 // pred_check
      _
    $region43: #{tpu_custom_call.1} parent=1 // pred_check_branch
      %48 = sbr.rel (0) target = $region45
    $region44: #{tpu_custom_call.1} parent=1 // pred_region
      %49 = dma.done [#allocation5], 16
    $region45: #{tpu_custom_call.1} parent=1 // pred_fallthru
      _
    %50 = sfence
    %s51 = sld [smem:[#allocation3]]
    %s52 = sld [smem:[#allocation3 + $0x1]]
    %s53 = ssub.f32 0.0, %s52
    %v54 = vld [vmem:[%s1] sm:$0x7]
    %v55 = vld [vmem:[%s9] sm:$0x7]
    %v56 = vld [vmem:[%s2] sm:$0x7]
    %58 = vset.pattern.permute.xlu0 0
    %59 = vperm.xlu0 %58, %v56
    %v60 = vpop.permute.xlu0 %59
    %vm62 = vcmask 23552
    %v64 = vsel %vm62, %v54, 0
    %vm66 = vcmask 1042432
    %v68 = vsel %vm66, %v55, 0
    %70 = vmatprep.subr.mxu0 0.0
    %71 = vmatpush1.msra.mxu0 %v68
    %72 = vmatprep.subr.mxu0 0.0
    %73 = vmatpush1.msra.mxu0 0.0
    %74 = vmatprep.subr.mxu0 0.0
    %75 = vmatpush1.msra.mxu0 0.0
    %76 = vmatprep.subr.mxu0 0.0
    %77 = vmatpush1.msra.mxu0 0.0
    %78 = vmatprep.subr.mxu0 0.0
    %79 = vmatpush1.msra.mxu0 0.0
    %80 = vmatprep.subr.mxu0 0.0
    %81 = vmatpush1.msra.mxu0 0.0
    %82 = vmatprep.subr.mxu0 0.0
    %83 = vmatpush1.msra.mxu0 0.0
    %84 = vmatprep.subr.mxu0 0.0
    %85 = vmatpush1.msra.mxu0 0.0
    %86 = vmatprep.subr.mxu0 0.0
    %87 = vmatpush1.msra.mxu0 0.0
    %88 = vmatprep.subr.mxu0 0.0
    %89 = vmatpush1.msra.mxu0 0.0
    %90 = vmatprep.subr.mxu0 0.0
    %91 = vmatpush1.msra.mxu0 0.0
    %92 = vmatprep.subr.mxu0 0.0
    %93 = vmatpush1.msra.mxu0 0.0
    %94 = vmatprep.subr.mxu0 0.0
    %95 = vmatpush1.msra.mxu0 0.0
    %96 = vmatprep.subr.mxu0 0.0
    %97 = vmatpush1.msra.mxu0 0.0
    %98 = vmatprep.subr.mxu0 0.0
    %99 = vmatpush1.msra.mxu0 0.0
    %100 = vmatprep.subr.mxu0 0.0
    %101 = vmatpush1.msra.mxu0 0.0
    %102 = vmatprep.subr.mxu0 0.0
    %103 = vmatpush1.msra.mxu0 0.0
    %104 = vmatprep.subr.mxu0 0.0
    %105 = vmatpush1.msra.mxu0 0.0
    %106 = vmatprep.subr.mxu0 0.0
    %107 = vmatpush1.msra.mxu0 0.0
    %108 = vmatprep.subr.mxu0 0.0
    %109 = vmatpush1.msra.mxu0 0.0
    %110 = vmatprep.subr.mxu0 0.0
    %111 = vmatpush1.msra.mxu0 0.0
    %112 = vmatprep.subr.mxu0 0.0
    %113 = vmatpush1.msra.mxu0 0.0
    %114 = vmatprep.subr.mxu0 0.0
    %115 = vmatpush1.msra.mxu0 0.0
    %116 = vmatprep.subr.mxu0 0.0
    %117 = vmatpush1.msra.mxu0 0.0
    %118 = vmatprep.subr.mxu0 0.0
    %119 = vmatpush1.msra.mxu0 0.0
    %120 = vmatprep.subr.mxu0 0.0
    %121 = vmatpush1.msra.mxu0 0.0
    %122 = vmatprep.subr.mxu0 0.0
    %123 = vmatpush1.msra.mxu0 0.0
    %124 = vmatprep.subr.mxu0 0.0
    %125 = vmatpush1.msra.mxu0 0.0
    %126 = vmatprep.subr.mxu0 0.0
    %127 = vmatpush1.msra.mxu0 0.0
    %128 = vmatprep.subr.mxu0 0.0
    %129 = vmatpush1.msra.mxu0 0.0
    %130 = vmatprep.subr.mxu0 0.0
    %131 = vmatpush1.msra.mxu0 0.0
    %132 = vmatprep.subr.mxu0 0.0
    %133 = vmatpush1.msra.mxu0 0.0
    %134 = vmatprep.mubr.f32.mxu0 0.0
    %135 = vmatmul.mubr.f32.gmra.mrb[0].mxu0 %v64
    %v136 = vpop.f32.mrb[0].mxu0
    %v137 = vadd.f32 %v60, %v136
    %v138 = vpop.f32.mrb[0].mxu0
    %139 = vdwg.mxu0
    %v140 = vmul.f32 %v137, %v137
    %v141 = vsel %vm66, %v140, 0.0
    %v142 = vrot.slane %v141, 4
    %v143 = vadd.f32 %v141, %v142
    %v144 = vrot.slane %v143, 2
    %v145 = vadd.f32 %v143, %v144
    %v146 = vrot.slane %v145, 1
    %v147 = vadd.f32 %v145, %v146
    %v148 = vstv %s51
    %v149 = vadd.f32 %v148, %v147
    %v150 = vlog2.pop %v149
    %v151 = vmul.f32 %v150, 0.6931472
    %v152 = vstv %s53
    %v153 = vmul.f32 %v152, %v151
    %v154 = vmul.f32 %v153, 1.442695
    %v155 = vpow.pop %v154
    %v156 = vld [vmem:[%s3] sm:$0xff]
    %v157 = vld [vmem:[%s3 + $0x8] sm:$0xff]
    %v158 = vld [vmem:[%s3 + $0x10] sm:$0xf]
    %v159 = vld [vmem:[%s4] sm:$0xff]
    %v160 = vld [vmem:[%s4 + $0x8] sm:$0xff]
    %v161 = vld [vmem:[%s4 + $0x10] sm:$0xf]
    %163 = vset.pattern.permute.xlu0 0
    %164 = vperm.xlu0 %163, %v159
    %v165 = vpop.permute.xlu0 %164
    %168 = vset.pattern.permute.xlu0 0
    %169 = vperm.xlu0 %168, %v160
    %v170 = vpop.permute.xlu0 %169
    %173 = vset.pattern.permute.xlu0 0
    %174 = vperm.xlu0 %173, %v161
    %v175 = vpop.permute.xlu0 %174
    %v178 = vsel %vm62, %v156, 0
    %v181 = vsel %vm62, %v157, 0
    %v184 = vsel %vm62, %v158, 0
    %v187 = vsel %vm66, %v137, 0
    %189 = vmatprep.subr.mxu0 0.0
    %190 = vmatpush1.msra.mxu0 %v187
    %191 = vmatprep.subr.mxu0 0.0
    %192 = vmatpush1.msra.mxu0 0.0
    %193 = vmatprep.subr.mxu0 0.0
    %194 = vmatpush1.msra.mxu0 0.0
    %195 = vmatprep.subr.mxu0 0.0
    %196 = vmatpush1.msra.mxu0 0.0
    %197 = vmatprep.subr.mxu0 0.0
    %198 = vmatpush1.msra.mxu0 0.0
    %199 = vmatprep.subr.mxu0 0.0
    %200 = vmatpush1.msra.mxu0 0.0
    %201 = vmatprep.subr.mxu0 0.0
    %202 = vmatpush1.msra.mxu0 0.0
    %203 = vmatprep.subr.mxu0 0.0
    %204 = vmatpush1.msra.mxu0 0.0
    %205 = vmatprep.subr.mxu0 0.0
    %206 = vmatpush1.msra.mxu0 0.0
    %207 = vmatprep.subr.mxu0 0.0
    %208 = vmatpush1.msra.mxu0 0.0
    %209 = vmatprep.subr.mxu0 0.0
    %210 = vmatpush1.msra.mxu0 0.0
    %211 = vmatprep.subr.mxu0 0.0
    %212 = vmatpush1.msra.mxu0 0.0
    %213 = vmatprep.subr.mxu0 0.0
    %214 = vmatpush1.msra.mxu0 0.0
    %215 = vmatprep.subr.mxu0 0.0
    %216 = vmatpush1.msra.mxu0 0.0
    %217 = vmatprep.subr.mxu0 0.0
    %218 = vmatpush1.msra.mxu0 0.0
    %219 = vmatprep.subr.mxu0 0.0
    %220 = vmatpush1.msra.mxu0 0.0
    %221 = vmatprep.subr.mxu0 0.0
    %222 = vmatpush1.msra.mxu0 0.0
    %223 = vmatprep.subr.mxu0 0.0
    %224 = vmatpush1.msra.mxu0 0.0
    %225 = vmatprep.subr.mxu0 0.0
    %226 = vmatpush1.msra.mxu0 0.0
    %227 = vmatprep.subr.mxu0 0.0
    %228 = vmatpush1.msra.mxu0 0.0
    %229 = vmatprep.subr.mxu0 0.0
    %230 = vmatpush1.msra.mxu0 0.0
    %231 = vmatprep.subr.mxu0 0.0
    %232 = vmatpush1.msra.mxu0 0.0
    %233 = vmatprep.subr.mxu0 0.0
    %234 = vmatpush1.msra.mxu0 0.0
    %235 = vmatprep.subr.mxu0 0.0
    %236 = vmatpush1.msra.mxu0 0.0
    %237 = vmatprep.subr.mxu0 0.0
    %238 = vmatpush1.msra.mxu0 0.0
    %239 = vmatprep.subr.mxu0 0.0
    %240 = vmatpush1.msra.mxu0 0.0
    %241 = vmatprep.subr.mxu0 0.0
    %242 = vmatpush1.msra.mxu0 0.0
    %243 = vmatprep.subr.mxu0 0.0
    %244 = vmatpush1.msra.mxu0 0.0
    %245 = vmatprep.subr.mxu0 0.0
    %246 = vmatpush1.msra.mxu0 0.0
    %247 = vmatprep.subr.mxu0 0.0
    %248 = vmatpush1.msra.mxu0 0.0
    %249 = vmatprep.subr.mxu0 0.0
    %250 = vmatpush1.msra.mxu0 0.0
    %251 = vmatprep.subr.mxu0 0.0
    %252 = vmatpush1.msra.mxu0 0.0
    %253 = vmatprep.mubr.f32.mxu0 0.0
    %254 = vmatmul.mubr.f32.gmra.mrb[0].mxu0 %v178
    %v255 = vpop.f32.mrb[0].mxu0
    %v256 = vadd.f32 %v165, %v255
    %v257 = vpop.f32.mrb[0].mxu0
    %258 = vmatprep.mubr.f32.mxu0 0.0
    %259 = vmatmul.mubr.f32.gmra.mrb[0].mxu0 %v181
    %v260 = vpop.f32.mrb[0].mxu0
    %v261 = vadd.f32 %v170, %v260
    %v262 = vpop.f32.mrb[0].mxu0
    %263 = vmatprep.mubr.f32.mxu0 0.0
    %264 = vmatmul.mubr.f32.gmra.mrb[0].mxu0 %v184
    %v265 = vpop.f32.mrb[0].mxu0
    %v266 = vadd.f32 %v175, %v265
    %v267 = vpop.f32.mrb[0].mxu0
    %268 = vdwg.mxu0
    %vm269 = vcmp.gt.f32.partialorder %v256, 20.0
    %vm270 = vcmp.gt.f32.partialorder %v261, 20.0
    %vm271 = vcmp.gt.f32.partialorder %v266, 20.0
    %v272 = vmin.f32 %v256, 20.0
    %v273 = vmin.f32 %v261, 20.0
    %v274 = vmin.f32 %v266, 20.0
    %v275 = vmul.f32 %v272, 1.442695
    %v276 = vpow.pop %v275
    %v277 = vmul.f32 %v273, 1.442695
    %v278 = vpow.pop %v277
    %v279 = vmul.f32 %v274, 1.442695
    %v280 = vpow.pop %v279
    %v281 = vadd.f32 %v276, 1.0
    %v282 = vlog2.pop %v281
    %v283 = vmul.f32 %v282, 0.6931472
    %v284 = vmul.f32 -0.5, %v276
    %v285 = vadd.f32 %v284, 1.0
    %v286 = vmul.f32 %v285, %v276
    %v287 = vand.u32 2147483647, %v276
    %vm288 = vcmp.lt.f32.partialorder %v287, 0.0004427343
    %v289 = vsel %vm288, %v286, %v283
    %v290 = vadd.f32 %v278, 1.0
    %v291 = vlog2.pop %v290
    %v292 = vmul.f32 %v291, 0.6931472
    %v293 = vmul.f32 -0.5, %v278
    %v294 = vadd.f32 %v293, 1.0
    %v295 = vmul.f32 %v294, %v278
    %v296 = vand.u32 2147483647, %v278
    %vm297 = vcmp.lt.f32.partialorder %v296, 0.0004427343
    %v298 = vsel %vm297, %v295, %v292
    %v299 = vadd.f32 %v280, 1.0
    %v300 = vlog2.pop %v299
    %v301 = vmul.f32 %v300, 0.6931472
    %v302 = vmul.f32 -0.5, %v280
    %v303 = vadd.f32 %v302, 1.0
    %v304 = vmul.f32 %v303, %v280
    %v305 = vand.u32 2147483647, %v280
    %vm306 = vcmp.lt.f32.partialorder %v305, 0.0004427343
    %v307 = vsel %vm306, %v304, %v301
    %v308 = vsel %vm269, %v256, %v289
    %v309 = vsel %vm270, %v261, %v298
    %v310 = vsel %vm271, %v266, %v307
    %v311 = vld [vmem:[%s5] sm:$0xff]
    %v312 = vld [vmem:[%s5 + $0x8] sm:$0xff]
    %v313 = vld [vmem:[%s5 + $0x10] sm:$0xf]
    %v314 = vld [vmem:[%s6] sm:$0xff]
    %v315 = vld [vmem:[%s6 + $0x8] sm:$0xff]
    %v316 = vld [vmem:[%s6 + $0x10] sm:$0xf]
    %318 = vset.pattern.permute.xlu0 0
    %319 = vperm.xlu0 %318, %v314
    %v320 = vpop.permute.xlu0 %319
    %323 = vset.pattern.permute.xlu0 0
    %324 = vperm.xlu0 %323, %v315
    %v325 = vpop.permute.xlu0 %324
    %328 = vset.pattern.permute.xlu0 0
    %329 = vperm.xlu0 %328, %v316
    %v330 = vpop.permute.xlu0 %329
    %vm332 = vcmask 162816
    %v334 = vsel %vm332, %v311, 0
    %v337 = vsel %vm332, %v312, 0
    %v340 = vsel %vm332, %v313, 0
    %vm342 = vcmask 1043456
    %v344 = vsel %vm342, %v310, 0
    %346 = vmatprep.subr.mxu0 0.0
    %347 = vmatpush1.msra.mxu0 %v308
    %348 = vmatprep.subr.mxu0 0.0
    %349 = vmatpush1.msra.mxu0 %v309
    %350 = vmatprep.subr.mxu0 0.0
    %351 = vmatpush1.msra.mxu0 %v344
    %352 = vmatprep.subr.mxu0 0.0
    %353 = vmatpush1.msra.mxu0 0.0
    %354 = vmatprep.subr.mxu0 0.0
    %355 = vmatpush1.msra.mxu0 0.0
    %356 = vmatprep.subr.mxu0 0.0
    %357 = vmatpush1.msra.mxu0 0.0
    %358 = vmatprep.subr.mxu0 0.0
    %359 = vmatpush1.msra.mxu0 0.0
    %360 = vmatprep.subr.mxu0 0.0
    %361 = vmatpush1.msra.mxu0 0.0
    %362 = vmatprep.subr.mxu0 0.0
    %363 = vmatpush1.msra.mxu0 0.0
    %364 = vmatprep.subr.mxu0 0.0
    %365 = vmatpush1.msra.mxu0 0.0
    %366 = vmatprep.subr.mxu0 0.0
    %367 = vmatpush1.msra.mxu0 0.0
    %368 = vmatprep.subr.mxu0 0.0
    %369 = vmatpush1.msra.mxu0 0.0
    %370 = vmatprep.subr.mxu0 0.0
    %371 = vmatpush1.msra.mxu0 0.0
    %372 = vmatprep.subr.mxu0 0.0
    %373 = vmatpush1.msra.mxu0 0.0
    %374 = vmatprep.subr.mxu0 0.0
    %375 = vmatpush1.msra.mxu0 0.0
    %376 = vmatprep.subr.mxu0 0.0
    %377 = vmatpush1.msra.mxu0 0.0
    %378 = vmatprep.subr.mxu0 0.0
    %379 = vmatpush1.msra.mxu0 0.0
    %380 = vmatprep.subr.mxu0 0.0
    %381 = vmatpush1.msra.mxu0 0.0
    %382 = vmatprep.subr.mxu0 0.0
    %383 = vmatpush1.msra.mxu0 0.0
    %384 = vmatprep.subr.mxu0 0.0
    %385 = vmatpush1.msra.mxu0 0.0
    %386 = vmatprep.subr.mxu0 0.0
    %387 = vmatpush1.msra.mxu0 0.0
    %388 = vmatprep.subr.mxu0 0.0
    %389 = vmatpush1.msra.mxu0 0.0
    %390 = vmatprep.subr.mxu0 0.0
    %391 = vmatpush1.msra.mxu0 0.0
    %392 = vmatprep.subr.mxu0 0.0
    %393 = vmatpush1.msra.mxu0 0.0
    %394 = vmatprep.subr.mxu0 0.0
    %395 = vmatpush1.msra.mxu0 0.0
    %396 = vmatprep.subr.mxu0 0.0
    %397 = vmatpush1.msra.mxu0 0.0
    %398 = vmatprep.subr.mxu0 0.0
    %399 = vmatpush1.msra.mxu0 0.0
    %400 = vmatprep.subr.mxu0 0.0
    %401 = vmatpush1.msra.mxu0 0.0
    %402 = vmatprep.subr.mxu0 0.0
    %403 = vmatpush1.msra.mxu0 0.0
    %404 = vmatprep.subr.mxu0 0.0
    %405 = vmatpush1.msra.mxu0 0.0
    %406 = vmatprep.subr.mxu0 0.0
    %407 = vmatpush1.msra.mxu0 0.0
    %408 = vmatprep.subr.mxu0 0.0
    %409 = vmatpush1.msra.mxu0 0.0
    %410 = vmatprep.mubr.f32.mxu0 0.0
    %411 = vmatmul.mubr.f32.gmra.mrb[0].mxu0 %v334
    %v412 = vpop.f32.mrb[0].mxu0
    %v413 = vadd.f32 %v320, %v412
    %v414 = vpop.f32.mrb[0].mxu0
    %415 = vmatprep.mubr.f32.mxu0 0.0
    %416 = vmatmul.mubr.f32.gmra.mrb[0].mxu0 %v337
    %v417 = vpop.f32.mrb[0].mxu0
    %v418 = vadd.f32 %v325, %v417
    %v419 = vpop.f32.mrb[0].mxu0
    %420 = vmatprep.mubr.f32.mxu0 0.0
    %421 = vmatmul.mubr.f32.gmra.mrb[0].mxu0 %v340
    %v422 = vpop.f32.mrb[0].mxu0
    %v423 = vadd.f32 %v330, %v422
    %v424 = vpop.f32.mrb[0].mxu0
    %425 = vdwg.mxu0
    %vm426 = vcmp.gt.f32.partialorder %v413, 20.0
    %vm427 = vcmp.gt.f32.partialorder %v418, 20.0
    %vm428 = vcmp.gt.f32.partialorder %v423, 20.0
    %v429 = vmin.f32 %v413, 20.0
    %v430 = vmin.f32 %v418, 20.0
    %v431 = vmin.f32 %v423, 20.0
    %v432 = vmul.f32 %v429, 1.442695
    %v433 = vpow.pop %v432
    %v434 = vmul.f32 %v430, 1.442695
    %v435 = vpow.pop %v434
    %v436 = vmul.f32 %v431, 1.442695
    %v437 = vpow.pop %v436
    %v438 = vadd.f32 %v433, 1.0
    %v439 = vlog2.pop %v438
    %v440 = vmul.f32 %v439, 0.6931472
    %v441 = vmul.f32 -0.5, %v433
    %v442 = vadd.f32 %v441, 1.0
    %v443 = vmul.f32 %v442, %v433
    %v444 = vand.u32 2147483647, %v433
    %vm445 = vcmp.lt.f32.partialorder %v444, 0.0004427343
    %v446 = vsel %vm445, %v443, %v440
    %v447 = vadd.f32 %v435, 1.0
    %v448 = vlog2.pop %v447
    %v449 = vmul.f32 %v448, 0.6931472
    %v450 = vmul.f32 -0.5, %v435
    %v451 = vadd.f32 %v450, 1.0
    %v452 = vmul.f32 %v451, %v435
    %v453 = vand.u32 2147483647, %v435
    %vm454 = vcmp.lt.f32.partialorder %v453, 0.0004427343
    %v455 = vsel %vm454, %v452, %v449
    %v456 = vadd.f32 %v437, 1.0
    %v457 = vlog2.pop %v456
    %v458 = vmul.f32 %v457, 0.6931472
    %v459 = vmul.f32 -0.5, %v437
    %v460 = vadd.f32 %v459, 1.0
    %v461 = vmul.f32 %v460, %v437
    %v462 = vand.u32 2147483647, %v437
    %vm463 = vcmp.lt.f32.partialorder %v462, 0.0004427343
    %v464 = vsel %vm463, %v461, %v458
    %v465 = vsel %vm426, %v413, %v446
    %v466 = vsel %vm427, %v418, %v455
    %v467 = vsel %vm428, %v423, %v464
    %v468 = vld [vmem:[%s7] sm:$0x1]
    %v469 = vld [vmem:[#allocation2] sm:$0x1]
    %471 = vset.pattern.permute.xlu0 0
    %472 = vperm.xlu0 %471, %v469
    %v473 = vpop.permute.xlu0 %472
    %v475 = vlaneseq
    %v476 = vshrl.u32 %v475, 7
    %v477 = vsub.s32 0, %v476
    %v478 = vrot.slane %v473, %v477
    %v480 = vsel %vm332, %v468, 0
    %v483 = vsel %vm342, %v467, 0
    %485 = vmatprep.subr.mxu0 0.0
    %486 = vmatpush1.msra.mxu0 %v465
    %487 = vmatprep.subr.mxu0 0.0
    %488 = vmatpush1.msra.mxu0 %v466
    %489 = vmatprep.subr.mxu0 0.0
    %490 = vmatpush1.msra.mxu0 %v483
    %491 = vmatprep.subr.mxu0 0.0
    %492 = vmatpush1.msra.mxu0 0.0
    %493 = vmatprep.subr.mxu0 0.0
    %494 = vmatpush1.msra.mxu0 0.0
    %495 = vmatprep.subr.mxu0 0.0
    %496 = vmatpush1.msra.mxu0 0.0
    %497 = vmatprep.subr.mxu0 0.0
    %498 = vmatpush1.msra.mxu0 0.0
    %499 = vmatprep.subr.mxu0 0.0
    %500 = vmatpush1.msra.mxu0 0.0
    %501 = vmatprep.subr.mxu0 0.0
    %502 = vmatpush1.msra.mxu0 0.0
    %503 = vmatprep.subr.mxu0 0.0
    %504 = vmatpush1.msra.mxu0 0.0
    %505 = vmatprep.subr.mxu0 0.0
    %506 = vmatpush1.msra.mxu0 0.0
    %507 = vmatprep.subr.mxu0 0.0
    %508 = vmatpush1.msra.mxu0 0.0
    %509 = vmatprep.subr.mxu0 0.0
    %510 = vmatpush1.msra.mxu0 0.0
    %511 = vmatprep.subr.mxu0 0.0
    %512 = vmatpush1.msra.mxu0 0.0
    %513 = vmatprep.subr.mxu0 0.0
    %514 = vmatpush1.msra.mxu0 0.0
    %515 = vmatprep.subr.mxu0 0.0
    %516 = vmatpush1.msra.mxu0 0.0
    %517 = vmatprep.subr.mxu0 0.0
    %518 = vmatpush1.msra.mxu0 0.0
    %519 = vmatprep.subr.mxu0 0.0
    %520 = vmatpush1.msra.mxu0 0.0
    %521 = vmatprep.subr.mxu0 0.0
    %522 = vmatpush1.msra.mxu0 0.0
    %523 = vmatprep.subr.mxu0 0.0
    %524 = vmatpush1.msra.mxu0 0.0
    %525 = vmatprep.subr.mxu0 0.0
    %526 = vmatpush1.msra.mxu0 0.0
    %527 = vmatprep.subr.mxu0 0.0
    %528 = vmatpush1.msra.mxu0 0.0
    %529 = vmatprep.subr.mxu0 0.0
    %530 = vmatpush1.msra.mxu0 0.0
    %531 = vmatprep.subr.mxu0 0.0
    %532 = vmatpush1.msra.mxu0 0.0
    %533 = vmatprep.subr.mxu0 0.0
    %534 = vmatpush1.msra.mxu0 0.0
    %535 = vmatprep.subr.mxu0 0.0
    %536 = vmatpush1.msra.mxu0 0.0
    %537 = vmatprep.subr.mxu0 0.0
    %538 = vmatpush1.msra.mxu0 0.0
    %539 = vmatprep.subr.mxu0 0.0
    %540 = vmatpush1.msra.mxu0 0.0
    %541 = vmatprep.subr.mxu0 0.0
    %542 = vmatpush1.msra.mxu0 0.0
    %543 = vmatprep.subr.mxu0 0.0
    %544 = vmatpush1.msra.mxu0 0.0
    %545 = vmatprep.subr.mxu0 0.0
    %546 = vmatpush1.msra.mxu0 0.0
    %547 = vmatprep.subr.mxu0 0.0
    %548 = vmatpush1.msra.mxu0 0.0
    %549 = vmatprep.mubr.f32.mxu0 0.0
    %550 = vmatmul.mubr.f32.gmra.mrb[0].mxu0 %v480
    %v551 = vpop.f32.mrb[0].mxu0
    %v552 = vadd.f32 %v478, %v551
    %v553 = vpop.f32.mrb[0].mxu0
    %554 = vdwg.mxu0
    %vm555 = vcmp.gt.f32.partialorder %v552, 20.0
    %v556 = vmin.f32 %v552, 20.0
    %v557 = vmul.f32 %v556, 1.442695
    %v558 = vpow.pop %v557
    %v559 = vadd.f32 %v558, 1.0
    %v560 = vlog2.pop %v559
    %v561 = vmul.f32 %v560, 0.6931472
    %v562 = vmul.f32 -0.5, %v558
    %v563 = vadd.f32 %v562, 1.0
    %v564 = vmul.f32 %v563, %v558
    %v565 = vand.u32 2147483647, %v558
    %vm566 = vcmp.lt.f32.partialorder %v565, 0.0004427343
    %v567 = vsel %vm566, %v564, %v561
    %v568 = vsel %vm555, %v552, %v567
    %v569 = vmul.f32 %v155, %v568
    %570 = vst [vmem:[#allocation6] sm:$0x1] %v569
    // Predicated region
    $region46: #{tpu_custom_call.1} parent=1 // pred_check
      _
    $region47: #{tpu_custom_call.1} parent=1 // pred_check_branch
      %572 = sbr.rel (0) target = $region49
    $region48: #{tpu_custom_call.1} parent=1 // pred_region
      %s574 = ssub.s32 16, 16
      %575 = vsyncadd [#allocation4], %s574
      %s577 = sshll.u32 [#allocation6], 4
      %s578 = int_to_ptr.vmem [resolvable:$true] %s577
      %580 = dma.vmem_to_hbm [thread:$0]  %s578, 16, %s10, [#allocation4]
    $region49: #{tpu_custom_call.1} parent=1 // pred_fallthru
      _
    // Predicated region
    $region50: #{tpu_custom_call.1} parent=1 // pred_check
      _
    $region51: #{tpu_custom_call.1} parent=1 // pred_check_branch
      %582 = sbr.rel (0) target = $region53
    $region52: #{tpu_custom_call.1} parent=1 // pred_region
      %583 = dma.done [#allocation4], 16
    $region53: #{tpu_custom_call.1} parent=1 // pred_fallthru
      _
    %584 = vsyncpa [#allocation4], 1
    %585 = vsyncpa [#allocation5], 1

</llo_original>
